<compile_context>
chip_gen: v6e
topology: v6e:2x2x1
jax: 0.10.0
libtpu: 0.0.40
codegen_flags: <defaults>
</compile_context>

<pallas_src>
import functools

import jax
import jax.numpy as jnp
from jax.experimental import pallas as pl
from jax.experimental.pallas import tpu as pltpu


def _round_up(a, b):
    return -(-a // b) * b


def _eqlv2_kernel(label_ref, cls_ref,
                  sbce_ref, sbcet_ref, sg_ref, sgt_ref,
                  *, steps_per_split, tile_n, n_valid, mask_rows):
    i = pl.program_id(0)          # split ("parallel") axis
    j = pl.program_id(1)          # reduction axis over row tiles

    @pl.when(j == 0)
    def _():
        sbce_ref[...] = jnp.zeros_like(sbce_ref)
        sbcet_ref[...] = jnp.zeros_like(sbcet_ref)
        sg_ref[...] = jnp.zeros_like(sg_ref)
        sgt_ref[...] = jnp.zeros_like(sgt_ref)

    x = cls_ref[...].astype(jnp.float32)          # (tn, Cp) logits, f32 compute
    labels = label_ref[...]                       # (tn, 1) int32
    tn, Cp = x.shape

    # expand_label: one-hot of gt class per row ((1, Cp) iota, sublane-broadcast).
    col = jax.lax.broadcasted_iota(jnp.int32, (1, Cp), 1)
    is_pos = col == labels                        # (tn, Cp) bool one-hot
    target = is_pos.astype(jnp.float32)

    # Numerically stable binary_cross_entropy_with_logits (per-class weights are
    # factored out and applied after the column reduction, in the wrapper).
    e = jnp.exp(-jnp.abs(x))
    bce = jnp.maximum(x, 0.0) - x * target + jnp.log1p(e)

    # grad = |sigmoid(x) - target| without the 1 - sigmoid cancellation:
    #   x >= 0: sigmoid = s,   1 - sigmoid = e*s     (s = 1/(1+e), e = exp(-|x|))
    #   x <  0: sigmoid = e*s, 1 - sigmoid = s
    s = 1.0 / (1.0 + e)                           # exact sigmoid path
    grad = jnp.where(jnp.logical_xor(is_pos, x >= 0.0), s, e * s)

    if mask_rows:
        # Zero the contribution of padded rows (two broadcast multiplies only).
        row = (i * steps_per_split + j) * tile_n + jax.lax.broadcasted_iota(
            jnp.int32, (tn, 1), 0)
        valid = (row < n_valid).astype(jnp.float32)   # (tn, 1)
        bce = bce * valid
        grad = grad * valid

    # Four per-class partial sums; out blocks stay resident across the j axis.
    sbce_ref[...] += jnp.sum(bce, axis=0, keepdims=True)
    sbcet_ref[...] += jnp.sum(bce * target, axis=0, keepdims=True)
    sg_ref[...] += jnp.sum(grad, axis=0, keepdims=True)
    sgt_ref[...] += jnp.sum(grad * target, axis=0, keepdims=True)


def eqlv2_loss(cls_score, label, pos_grad, neg_grad, pos_neg,
               *, mu=0.8, alpha=4.0, gamma=12.0, loss_weight=1.0,
               tile_n=1024, num_splits=2):
    """Returns (loss, new_pos_grad, new_neg_grad, new_pos_neg).

    cls_score: (N, C) float (f32/bf16), label: (N,) int in [0, C-1],
    buffers pos_grad/neg_grad/pos_neg: (C-1,) float32.
    """
    N, C = cls_score.shape
    num_classes = C - 1

    # get_weight(): map_func on the (num_classes,) pos_neg buffer + bg channel = 1.
    neg_w = jnp.concatenate([
        1.0 / (1.0 + jnp.exp(-gamma * (pos_neg.astype(jnp.float32) - mu))),
        jnp.ones((1,), jnp.float32)])
    pos_w = 1.0 + alpha * (1.0 - neg_w)           # (C,)

    # --- Pad the channel axis to a lane multiple (128); padded channels carry ---
    # --- zero logits and are dropped in the wrapper-side finalize.            ---
    C_pad = _round_up(C, 128)
    if C_pad != C:
        cls_score = jnp.pad(cls_score, ((0, 0), (0, C_pad - C)))

    # --- Pick a row tile: big, dtype-aligned, within default scoped VMEM.     ---
    # Budget includes the lane-padded (tile_n, 1)->(tile_n, 128) int32 label
    # block; both inputs are double-buffered by the pipeline.
    itemsize = jnp.dtype(cls_score.dtype).itemsize
    row_align = max(8, 32 // itemsize)            # f32: 8, bf16: 16, int8: 32
    bytes_per_row = 2 * (C_pad * itemsize + 128 * 4)
    tile_cap = max(row_align,
                   (6 * 1024 * 1024 // bytes_per_row) // row_align * row_align)
    rows_per_split = -(-N // num_splits)
    tile_n = min(tile_n, tile_cap, _round_up(rows_per_split, row_align))
    tile_n = max(row_align, (tile_n // row_align) * row_align)

    steps_per_split = -(-rows_per_split // tile_n)
    N_pad = num_splits * steps_per_split * tile_n
    mask_rows = N_pad != N
    if mask_rows:
        cls_score = jnp.pad(cls_score, ((0, N_pad - N), (0, 0)))
        label = jnp.pad(label, (0, N_pad - N))

    label2 = label.reshape(N_pad, 1).astype(jnp.int32)

    kernel = functools.partial(
        _eqlv2_kernel, steps_per_split=steps_per_split, tile_n=tile_n,
        n_valid=N, mask_rows=mask_rows)

    out_stat = jax.ShapeDtypeStruct((num_splits, 1, C_pad), jnp.float32)
    stat_spec = pl.BlockSpec((None, 1, C_pad), lambda i, j: (i, 0, 0))

    sbce_p, sbcet_p, sg_p, sgt_p = pl.pallas_call(
        kernel,
        out_shape=(out_stat, out_stat, out_stat, out_stat),
        grid_spec=pltpu.PrefetchScalarGridSpec(
            num_scalar_prefetch=0,
            grid=(num_splits, steps_per_split),
            in_specs=[
                pl.BlockSpec((tile_n, 1),
                             lambda i, j: (i * steps_per_split + j, 0)),   # labels
                pl.BlockSpec((tile_n, C_pad),
                             lambda i, j: (i * steps_per_split + j, 0)),   # logits
            ],
            out_specs=[stat_spec, stat_spec, stat_spec, stat_spec],
        ),
        compiler_params=pltpu.CompilerParams(
            dimension_semantics=("parallel", "arbitrary")),
    )(label2, cls_score)

    # ---- Finalize: fold per-class weights into the reduced statistics. -------
    s_bce = jnp.sum(sbce_p, axis=(0, 1))[:C]
    s_bce_t = jnp.sum(sbcet_p, axis=(0, 1))[:C]
    s_g = jnp.sum(sg_p, axis=(0, 1))[:C]
    s_gt = jnp.sum(sgt_p, axis=(0, 1))[:C]

    loss = loss_weight * jnp.sum(neg_w * s_bce + (pos_w - neg_w) * s_bce_t) / N

    # collect_grad buffer updates (drop the background channel).
    new_pos_grad = pos_grad + (pos_w * s_gt)[:num_classes]
    new_neg_grad = neg_grad + (neg_w * (s_g - s_gt))[:num_classes]
    new_pos_neg = new_pos_grad / (new_neg_grad + 1e-10)
    return loss, new_pos_grad, new_neg_grad, new_pos_neg


def _eqlv2_ref(cls_score, label, pos_neg, *, mu=0.8, alpha=4.0, gamma=12.0,
               loss_weight=1.0):
    """Pure-JAX reference of the PyTorch forward (loss + grad stats)."""
    N, C = cls_score.shape
    x = cls_score.astype(jnp.float32)
    target = jax.nn.one_hot(label, C, dtype=jnp.float32)
    neg_w = jnp.concatenate(
        [1.0 / (1.0 + jnp.exp(-gamma * (pos_neg - mu))), jnp.ones((1,))])
    pos_w = 1.0 + alpha * (1.0 - neg_w)
    weight = pos_w[None, :] * target + neg_w[None, :] * (1.0 - target)
    bce = jnp.maximum(x, 0.0) - x * target + jnp.log1p(jnp.exp(-jnp.abs(x)))
    loss = loss_weight * jnp.sum(bce * weight) / N
    prob = jax.nn.sigmoid(x)
    grad = jnp.abs(prob - target)
    pos_g = jnp.sum(grad * target * weight, axis=0)[:C - 1]
    neg_g = jnp.sum(grad * (1.0 - target) * weight, axis=0)[:C - 1]
    return loss, pos_g, neg_g


def _run_case(key, N, num_classes, dtype):
    C = num_classes + 1
    k1, k2, k3 = jax.random.split(key, 3)
    cls_score = jax.random.normal(k1, (N, C), dtype=jnp.float32).astype(dtype)
    label = jax.random.randint(k2, (N,), 0, C, dtype=jnp.int32)

    pos_grad = jnp.zeros((num_classes,), jnp.float32)
    neg_grad = jnp.zeros((num_classes,), jnp.float32)
    pos_neg = jnp.ones((num_classes,), jnp.float32) * 100.0
    # Make the weight map non-trivial.
    pos_neg = pos_neg.at[: num_classes // 2].set(
        jax.random.uniform(k3, (num_classes // 2,), minval=0.0, maxval=2.0))

    loss, new_pos_grad, new_neg_grad, new_pos_neg = jax.block_until_ready(
        eqlv2_loss(cls_score, label, pos_grad, neg_grad, pos_neg))

    ref_loss, ref_pos_g, ref_neg_g = _eqlv2_ref(
        cls_score.astype(jnp.float32), label, pos_neg)

    assert jnp.allclose(loss, ref_loss, rtol=1e-5, atol=1e-5), (loss, ref_loss)
    assert jnp.allclose(new_pos_grad, pos_grad + ref_pos_g,
                        rtol=1e-2, atol=1e-3), "pos_grad mismatch"
    assert jnp.allclose(new_neg_grad, neg_grad + ref_neg_g,
                        rtol=1e-2, atol=1e-3), "neg_grad mismatch"
    assert new_pos_neg.shape == (num_classes,)


if __name__ == "__main__":
    key = jax.random.PRNGKey(0)
    k1, k2 = jax.random.split(key)

    # Case 1: lane-aligned, no padding needed (num_classes=127 -> C=128), f32.
    _run_case(k1, N=16, num_classes=127, dtype=jnp.float32)

    # Case 2: unaligned C (130 -> padded to 256) and ragged N (100), bf16 input;
    # exercises channel/row padding + in-kernel row masking + bf16 streaming.
    _run_case(k2, N=100, num_classes=129, dtype=jnp.bfloat16)

    print("KERNEL_OK")
</pallas_src>

<mosaic_0001>
module attributes {stable_mosaic.version = 11 : i64} {
  func.func @_eqlv2_kernel(%arg0: i32, %arg1: i32, %arg2: memref<8x1xi32, #tpu.memory_space<vmem>>, %arg3: memref<8x128xf32, #tpu.memory_space<vmem>>, %arg4: memref<1x1x128xf32, #tpu.memory_space<vmem>>, %arg5: memref<1x1x128xf32, #tpu.memory_space<vmem>>, %arg6: memref<1x1x128xf32, #tpu.memory_space<vmem>>, %arg7: memref<1x1x128xf32, #tpu.memory_space<vmem>>) attributes {dimension_semantics = [#tpu.dimension_semantics<parallel>, #tpu.dimension_semantics<arbitrary>], iteration_bounds = array<i64: 2, 1>, scalar_prefetch = 0 : i64, scratch_operands = 0 : i64, tpu.core_type = #tpu.core_type<tc>, window_params = [{transform_indices = @transform_0, window_bounds = array<i64: 8, 1>}, {transform_indices = @transform_1, window_bounds = array<i64: 8, 128>}, {transform_indices = @transform_2, window_bounds = array<i64: 1, 1, 128>}, {transform_indices = @transform_3, window_bounds = array<i64: 1, 1, 128>}, {transform_indices = @transform_4, window_bounds = array<i64: 1, 1, 128>}, {transform_indices = @transform_5, window_bounds = array<i64: 1, 1, 128>}]} {
    %c0_i32 = arith.constant 0 : i32
    %0 = arith.cmpi eq, %arg1, %c0_i32 : i32
    %1 = arith.extui %0 : i1 to i32
    %c0_i32_0 = arith.constant 0 : i32
    %2 = arith.cmpi ne, %1, %c0_i32_0 : i32
    scf.if %2 {
      %cst_36 = arith.constant 0.000000e+00 : f32
      %64 = vector.broadcast %cst_36 : f32 to vector<1x128xf32>
      %c0_37 = arith.constant 0 : index
      %c0_38 = arith.constant 0 : index
      %c0_39 = arith.constant 0 : index
      %65 = vector.load %arg4[%c0_37, %c0_38, %c0_39] : memref<1x1x128xf32, #tpu.memory_space<vmem>>, vector<1x1x128xf32>
      %66 = vector.shape_cast %65 : vector<1x1x128xf32> to vector<1x128xf32>
      %67 = vector.shape_cast %64 : vector<1x128xf32> to vector<1x1x128xf32>
      tpu.vector_store %arg4[%c0_37, %c0_38, %c0_39], %67 {strides = array<i32>} : memref<1x1x128xf32, #tpu.memory_space<vmem>>, vector<1x1x128xf32>,
      %cst_40 = arith.constant 0.000000e+00 : f32
      %68 = vector.broadcast %cst_40 : f32 to vector<1x128xf32>
      %c0_41 = arith.constant 0 : index
      %c0_42 = arith.constant 0 : index
      %c0_43 = arith.constant 0 : index
      %69 = vector.load %arg5[%c0_41, %c0_42, %c0_43] : memref<1x1x128xf32, #tpu.memory_space<vmem>>, vector<1x1x128xf32>
      %70 = vector.shape_cast %69 : vector<1x1x128xf32> to vector<1x128xf32>
      %71 = vector.shape_cast %68 : vector<1x128xf32> to vector<1x1x128xf32>
      tpu.vector_store %arg5[%c0_41, %c0_42, %c0_43], %71 {strides = array<i32>} : memref<1x1x128xf32, #tpu.memory_space<vmem>>, vector<1x1x128xf32>,
      %cst_44 = arith.constant 0.000000e+00 : f32
      %72 = vector.broadcast %cst_44 : f32 to vector<1x128xf32>
      %c0_45 = arith.constant 0 : index
      %c0_46 = arith.constant 0 : index
      %c0_47 = arith.constant 0 : index
      %73 = vector.load %arg6[%c0_45, %c0_46, %c0_47] : memref<1x1x128xf32, #tpu.memory_space<vmem>>, vector<1x1x128xf32>
      %74 = vector.shape_cast %73 : vector<1x1x128xf32> to vector<1x128xf32>
      %75 = vector.shape_cast %72 : vector<1x128xf32> to vector<1x1x128xf32>
      tpu.vector_store %arg6[%c0_45, %c0_46, %c0_47], %75 {strides = array<i32>} : memref<1x1x128xf32, #tpu.memory_space<vmem>>, vector<1x1x128xf32>,
      %cst_48 = arith.constant 0.000000e+00 : f32
      %76 = vector.broadcast %cst_48 : f32 to vector<1x128xf32>
      %c0_49 = arith.constant 0 : index
      %c0_50 = arith.constant 0 : index
      %c0_51 = arith.constant 0 : index
      %77 = vector.load %arg7[%c0_49, %c0_50, %c0_51] : memref<1x1x128xf32, #tpu.memory_space<vmem>>, vector<1x1x128xf32>
      %78 = vector.shape_cast %77 : vector<1x1x128xf32> to vector<1x128xf32>
      %79 = vector.shape_cast %76 : vector<1x128xf32> to vector<1x1x128xf32>
      tpu.vector_store %arg7[%c0_49, %c0_50, %c0_51], %79 {strides = array<i32>} : memref<1x1x128xf32, #tpu.memory_space<vmem>>, vector<1x1x128xf32>,
    } else {
    }
    %c0 = arith.constant 0 : index
    %c0_1 = arith.constant 0 : index
    %3 = vector.load %arg3[%c0, %c0_1] : memref<8x128xf32, #tpu.memory_space<vmem>>, vector<8x128xf32>
    %c0_2 = arith.constant 0 : index
    %c0_3 = arith.constant 0 : index
    %4 = vector.load %arg2[%c0_2, %c0_3] : memref<8x1xi32, #tpu.memory_space<vmem>>, vector<8x1xi32>
    %5 = tpu.iota {dimensions = array<i32: 1>} : vector<1x128xi32>
    %6 = vector.broadcast %5 : vector<1x128xi32> to vector<8x128xi32>
    %7 = vector.broadcast %4 : vector<8x1xi32> to vector<8x128xi32>
    %8 = arith.cmpi eq, %6, %7 : vector<8x128xi32>
    %9 = arith.extui %8 : vector<8x128xi1> to vector<8x128xi32>
    %10 = arith.sitofp %9 : vector<8x128xi32> to vector<8x128xf32>
    %11 = math.absf %3 : vector<8x128xf32>
    %cst = arith.constant 0.000000e+00 : f32
    %12 = vector.broadcast %cst : f32 to vector<8x128xf32>
    %13 = arith.subf %12, %11 : vector<8x128xf32>
    %14 = math.exp %13 : vector<8x128xf32>
    %cst_4 = arith.constant 0.000000e+00 : f32
    %15 = vector.broadcast %cst_4 : f32 to vector<8x128xf32>
    %16 = arith.maximumf %3, %15 : vector<8x128xf32>
    %17 = arith.mulf %3, %10 : vector<8x128xf32>
    %18 = arith.subf %16, %17 : vector<8x128xf32>
    %19 = math.log1p %14 : vector<8x128xf32>
    %20 = arith.addf %18, %19 : vector<8x128xf32>
    %cst_5 = arith.constant 1.000000e+00 : f32
    %21 = vector.broadcast %cst_5 : f32 to vector<8x128xf32>
    %22 = arith.addf %21, %14 : vector<8x128xf32>
    %cst_6 = arith.constant 1.000000e+00 : f32
    %23 = vector.broadcast %cst_6 : f32 to vector<8x128xf32>
    %24 = arith.divf %23, %22 : vector<8x128xf32>
    %cst_7 = arith.constant 0.000000e+00 : f32
    %25 = vector.broadcast %cst_7 : f32 to vector<8x128xf32>
    %26 = arith.cmpf oge, %3, %25 : vector<8x128xf32>
    %27 = arith.xori %8, %26 : vector<8x128xi1>
    %28 = arith.mulf %14, %24 : vector<8x128xf32>
    %29 = arith.select %27, %24, %28 : vector<8x128xi1>, vector<8x128xf32>
    %c0_8 = arith.constant 0 : index
    %c0_9 = arith.constant 0 : index
    %c0_10 = arith.constant 0 : index
    %30 = vector.load %arg4[%c0_8, %c0_9, %c0_10] : memref<1x1x128xf32, #tpu.memory_space<vmem>>, vector<1x1x128xf32>
    %31 = vector.shape_cast %30 : vector<1x1x128xf32> to vector<1x128xf32>
    %cst_11 = arith.constant dense<0.000000e+00> : vector<128xf32>
    %32 = vector.multi_reduction <add>, %20, %cst_11 [0] : vector<8x128xf32> to vector<128xf32>
    %33 = vector.shape_cast %32 : vector<128xf32> to vector<1x128xf32>
    %34 = arith.addf %31, %33 : vector<1x128xf32>
    %c0_12 = arith.constant 0 : index
    %c0_13 = arith.constant 0 : index
    %c0_14 = arith.constant 0 : index
    %35 = vector.load %arg4[%c0_12, %c0_13, %c0_14] : memref<1x1x128xf32, #tpu.memory_space<vmem>>, vector<1x1x128xf32>
    %36 = vector.shape_cast %35 : vector<1x1x128xf32> to vector<1x128xf32>
    %37 = vector.shape_cast %34 : vector<1x128xf32> to vector<1x1x128xf32>
    tpu.vector_store %arg4[%c0_12, %c0_13, %c0_14], %37 {strides = array<i32>} : memref<1x1x128xf32, #tpu.memory_space<vmem>>, vector<1x1x128xf32>,
    %c0_15 = arith.constant 0 : index
    %c0_16 = arith.constant 0 : index
    %c0_17 = arith.constant 0 : index
    %38 = vector.load %arg5[%c0_15, %c0_16, %c0_17] : memref<1x1x128xf32, #tpu.memory_space<vmem>>, vector<1x1x128xf32>
    %39 = vector.shape_cast %38 : vector<1x1x128xf32> to vector<1x128xf32>
    %40 = arith.mulf %20, %10 : vector<8x128xf32>
    %cst_18 = arith.constant dense<0.000000e+00> : vector<128xf32>
    %41 = vector.multi_reduction <add>, %40, %cst_18 [0] : vector<8x128xf32> to vector<128xf32>
    %42 = vector.shape_cast %41 : vector<128xf32> to vector<1x128xf32>
    %43 = arith.addf %39, %42 : vector<1x128xf32>
    %c0_19 = arith.constant 0 : index
    %c0_20 = arith.constant 0 : index
    %c0_21 = arith.constant 0 : index
    %44 = vector.load %arg5[%c0_19, %c0_20, %c0_21] : memref<1x1x128xf32, #tpu.memory_space<vmem>>, vector<1x1x128xf32>
    %45 = vector.shape_cast %44 : vector<1x1x128xf32> to vector<1x128xf32>
    %46 = vector.shape_cast %43 : vector<1x128xf32> to vector<1x1x128xf32>
    tpu.vector_store %arg5[%c0_19, %c0_20, %c0_21], %46 {strides = array<i32>} : memref<1x1x128xf32, #tpu.memory_space<vmem>>, vector<1x1x128xf32>,
    %c0_22 = arith.constant 0 : index
    %c0_23 = arith.constant 0 : index
    %c0_24 = arith.constant 0 : index
    %47 = vector.load %arg6[%c0_22, %c0_23, %c0_24] : memref<1x1x128xf32, #tpu.memory_space<vmem>>, vector<1x1x128xf32>
    %48 = vector.shape_cast %47 : vector<1x1x128xf32> to vector<1x128xf32>
    %cst_25 = arith.constant dense<0.000000e+00> : vector<128xf32>
    %49 = vector.multi_reduction <add>, %29, %cst_25 [0] : vector<8x128xf32> to vector<128xf32>
    %50 = vector.shape_cast %49 : vector<128xf32> to vector<1x128xf32>
    %51 = arith.addf %48, %50 : vector<1x128xf32>
    %c0_26 = arith.constant 0 : index
    %c0_27 = arith.constant 0 : index
    %c0_28 = arith.constant 0 : index
    %52 = vector.load %arg6[%c0_26, %c0_27, %c0_28] : memref<1x1x128xf32, #tpu.memory_space<vmem>>, vector<1x1x128xf32>
    %53 = vector.shape_cast %52 : vector<1x1x128xf32> to vector<1x128xf32>
    %54 = vector.shape_cast %51 : vector<1x128xf32> to vector<1x1x128xf32>
    tpu.vector_store %arg6[%c0_26, %c0_27, %c0_28], %54 {strides = array<i32>} : memref<1x1x128xf32, #tpu.memory_space<vmem>>, vector<1x1x128xf32>,
    %c0_29 = arith.constant 0 : index
    %c0_30 = arith.constant 0 : index
    %c0_31 = arith.constant 0 : index
    %55 = vector.load %arg7[%c0_29, %c0_30, %c0_31] : memref<1x1x128xf32, #tpu.memory_space<vmem>>, vector<1x1x128xf32>
    %56 = vector.shape_cast %55 : vector<1x1x128xf32> to vector<1x128xf32>
    %57 = arith.mulf %29, %10 : vector<8x128xf32>
    %cst_32 = arith.constant dense<0.000000e+00> : vector<128xf32>
    %58 = vector.multi_reduction <add>, %57, %cst_32 [0] : vector<8x128xf32> to vector<128xf32>
    %59 = vector.shape_cast %58 : vector<128xf32> to vector<1x128xf32>
    %60 = arith.addf %56, %59 : vector<1x128xf32>
    %c0_33 = arith.constant 0 : index
    %c0_34 = arith.constant 0 : index
    %c0_35 = arith.constant 0 : index
    %61 = vector.load %arg7[%c0_33, %c0_34, %c0_35] : memref<1x1x128xf32, #tpu.memory_space<vmem>>, vector<1x1x128xf32>
    %62 = vector.shape_cast %61 : vector<1x1x128xf32> to vector<1x128xf32>
    %63 = vector.shape_cast %60 : vector<1x128xf32> to vector<1x1x128xf32>
    tpu.vector_store %arg7[%c0_33, %c0_34, %c0_35], %63 {strides = array<i32>} : memref<1x1x128xf32, #tpu.memory_space<vmem>>, vector<1x1x128xf32>,
    return
  }
  func.func @transform_0(%arg0: i32, %arg1: i32) -> (i32, i32) {
    %c1_i32 = arith.constant 1 : i32
    %0 = arith.muli %arg0, %c1_i32 : i32
    %1 = arith.addi %0, %arg1 : i32
    %c0_i32 = arith.constant 0 : i32
    %c0_i32_0 = arith.constant 0 : i32
    return %1, %c0_i32 : i32, i32
  }
  func.func @transform_1(%arg0: i32, %arg1: i32) -> (i32, i32) {
    %c1_i32 = arith.constant 1 : i32
    %0 = arith.muli %arg0, %c1_i32 : i32
    %1 = arith.addi %0, %arg1 : i32
    %c0_i32 = arith.constant 0 : i32
    %c0_i32_0 = arith.constant 0 : i32
    return %1, %c0_i32 : i32, i32
  }
  func.func @transform_2(%arg0: i32, %arg1: i32) -> (i32, i32, i32) {
    %c0_i32 = arith.constant 0 : i32
    %c0_i32_0 = arith.constant 0 : i32
    %c0_i32_1 = arith.constant 0 : i32
    return %arg0, %c0_i32, %c0_i32_0 : i32, i32, i32
  }
  func.func @transform_3(%arg0: i32, %arg1: i32) -> (i32, i32, i32) {
    %c0_i32 = arith.constant 0 : i32
    %c0_i32_0 = arith.constant 0 : i32
    %c0_i32_1 = arith.constant 0 : i32
    return %arg0, %c0_i32, %c0_i32_0 : i32, i32, i32
  }
  func.func @transform_4(%arg0: i32, %arg1: i32) -> (i32, i32, i32) {
    %c0_i32 = arith.constant 0 : i32
    %c0_i32_0 = arith.constant 0 : i32
    %c0_i32_1 = arith.constant 0 : i32
    return %arg0, %c0_i32, %c0_i32_0 : i32, i32, i32
  }
  func.func @transform_5(%arg0: i32, %arg1: i32) -> (i32, i32, i32) {
    %c0_i32 = arith.constant 0 : i32
    %c0_i32_0 = arith.constant 0 : i32
    %c0_i32_1 = arith.constant 0 : i32
    return %arg0, %c0_i32, %c0_i32_0 : i32, i32, i32
  }
}

</mosaic_0001>

<llo_original>
// kernel: tpu_custom_call.1
$region0: #{tpu_custom_call.1}
  #allocation0 [shape = 'u32[]', space=smem, size = 0x4, offset = 0x4, fixed_abs, tag = 'smem constant byte address 0x4 - core index']
  #allocation1 [shape = 'u32[144,128]{1,0:T(1,128)}', space=vmem, size = 0x12000, scoped, tag = 'internal scratch']
  %s0 = inlined_call_operand.vmem [shape: s32[16,1], index: 0, kind: input, shape index: {}]
  %s1 = inlined_call_operand.vmem [shape: f32[16,128], index: 1, kind: input, shape index: {}]
  %s2 = inlined_call_operand.hbm [shape: f32[2,1,128], index: 2, kind: output, shape index: {0}]
  %s3 = inlined_call_operand.hbm [shape: f32[2,1,128], index: 3, kind: output, shape index: {1}]
  %s4 = inlined_call_operand.hbm [shape: f32[2,1,128], index: 4, kind: output, shape index: {2}]
  %s5 = inlined_call_operand.hbm [shape: f32[2,1,128], index: 5, kind: output, shape index: {3}]
  %6 = xla_tuple %s2, %s3, %s4, %s5
  %s7 = sld [smem:[#allocation0]]
  $region69: #{tpu_custom_call.1} parent=0
    _
  %s9 = ssub.s32 1, %s7
  %s10 = scalar_select 0, %s9, %s7
  $region1: #{tpu_custom_call.1} parent=0
    #allocation2 [shape = 'u8[1024]{0}', space=vmem, size = 0x400, scoped, tag = 'output window, operand 0']
    #allocation3 [shape = 's32[2]{0}', space=sflag, size = 0x8, scoped, tag = 'scoped memory for tpu_custom_call.1']
    #allocation4 [shape = 'u8[1024]{0}', space=vmem, size = 0x400, scoped, tag = 'output window, operand 1']
    #allocation5 [shape = 's32[2]{0}', space=sflag, size = 0x8, scoped, tag = 'scoped memory for tpu_custom_call.1']
    #allocation6 [shape = 'u8[1024]{0}', space=vmem, size = 0x400, scoped, tag = 'output window, operand 2']
    #allocation7 [shape = 'u8[1024]{0}', space=vmem, size = 0x400, scoped, tag = 'output window, operand 3']
    #allocation8 [shape = 's32[2]{0}', space=sflag, size = 0x8, scoped, tag = 'scoped memory for tpu_custom_call.1']
    %11 = vsyncpa [#allocation3], 0
    %s12 = scalar_lea.sflag [#allocation3], 1
    %13 = vsyncpa %s12, 0
    %14 = vsyncpa [#allocation5], 0
    %s15 = scalar_lea.sflag [#allocation5], 1
    %16 = vsyncpa %s15, 0
    %17 = vsyncpa [#allocation8], 0
    %s18 = scalar_lea.sflag [#allocation8], 1
    %19 = vsyncpa %s18, 0
    loop: start=0, step=1, limit=4
    $region2: #{tpu_custom_call.1} parent=1 // loop_pre_header
      _
    $region3: #{tpu_custom_call.1} parent=1 // loop_header
      %s21 = sphi 0, %s25
      %p22 = scmp.ge.s32.totalorder %s21, 4
      %s28 = sphi 0, %s40
      %s29 = sphi 0, %s36
      %s30 = sphi 0, %s28
      %s31 = sphi 0, %s29
      %s32 = sphi 0, %s30
      %s33 = sphi 0, %s31
      %s45 = sphi 0, %s47
      %s48 = sphi 0, %s45
      %s49 = sphi 0, %s48
      %s65 = sphi 0, %s49
      %s73 = sphi 0, %s75
      %s76 = sphi 0, %s73
      %s77 = sphi 0, %s76
      %s93 = sphi 0, %s77
      %s99 = sphi 0, %s101
      %s102 = sphi 0, %s99
      %s103 = sphi 0, %s102
      %s119 = sphi 0, %s103
      %s125 = sphi 0, %s127
      %s128 = sphi 0, %s125
      %s129 = sphi 0, %s128
      %s145 = sphi 0, %s129
      %s151 = sphi 0, %s153
      %s154 = sphi 0, %s151
      %s155 = sphi 0, %s154
      %s171 = sphi 0, %s155
      %s177 = sphi 0, %s179
      %s180 = sphi 0, %s177
      %s181 = sphi 0, %s180
      %s197 = sphi 0, %s181
    $region4: #{tpu_custom_call.1} parent=1 // loop_header_branch
      %24 = sbr.rel (%p22) target = $region8
    $region5: #{tpu_custom_call.1} parent=1 // loop_body
      %s26 = ssub.s32 %s21, 1
      %s27 = ssub.s32 %s21, 2
      %s34 = sadd.s32 1, %s29
      %p35 = scmp.ge.s32.totalorder %s34, 1
      %s36 = scalar_select %p35, 0, %s34
      %s37 = sadd.s32 1, %s28
      %s38 = scalar_select %p35, %s37, %s28
      %p39 = scmp.ge.s32.totalorder %s38, 2
      %s40 = scalar_select %p39, 0, %s38
      %s41 = sadd.s32 %s28, %s29
      %s42 = sadd.s32 %s40, %s36
      %s43 = ssub.s32 %s41, %s42
      %p44 = scmp.eq.s32.totalorder %s43, 0
      %s46 = sadd.s32 %s45, 1
      %s47 = scalar_select %p44, %s45, %s46
      %p50 = pneg %p44
      %p51 = scmp.eq.s32.totalorder %s21, 1
      %p52 = por %p50, %p51
      %p53 = scmp.ne.s32.totalorder %s45, %s48
      %p54 = scmp.eq.s32.totalorder %s21, 0
      %p55 = por %p53, %p54
      %p56 = scmp.ne.s32.totalorder %s45, %s48
      %p57 = scmp.eq.s32.totalorder %s26, 1
      %p58 = por %p56, %p57
      %p59 = scmp.ne.s32.totalorder %s48, %s49
      %p60 = scmp.eq.s32.totalorder %s26, 0
      %p61 = por %p59, %p60
      %p62 = scmp.ne.s32.totalorder %s48, %s49
      %p63 = scmp.eq.s32.totalorder %s27, 1
      %p64 = por %p62, %p63
      %p66 = scmp.ne.s32.totalorder %s49, %s65
      %p67 = scmp.eq.s32.totalorder %s27, 0
      %p68 = por %p66, %p67
      %s69 = sadd.s32 %s28, %s29
      %s70 = sadd.s32 %s40, %s36
      %s71 = ssub.s32 %s69, %s70
      %p72 = scmp.eq.s32.totalorder %s71, 0
      %s74 = sadd.s32 %s73, 1
      %s75 = scalar_select %p72, %s73, %s74
      %p78 = pneg %p72
      %p79 = scmp.eq.s32.totalorder %s21, 1
      %p80 = por %p78, %p79
      %p81 = scmp.ne.s32.totalorder %s73, %s76
      %p82 = scmp.eq.s32.totalorder %s21, 0
      %p83 = por %p81, %p82
      %p84 = scmp.ne.s32.totalorder %s73, %s76
      %p85 = scmp.eq.s32.totalorder %s26, 1
      %p86 = por %p84, %p85
      %p87 = scmp.ne.s32.totalorder %s76, %s77
      %p88 = scmp.eq.s32.totalorder %s26, 0
      %p89 = por %p87, %p88
      %p90 = scmp.ne.s32.totalorder %s76, %s77
      %p91 = scmp.eq.s32.totalorder %s27, 1
      %p92 = por %p90, %p91
      %p94 = scmp.ne.s32.totalorder %s77, %s93
      %p95 = scmp.eq.s32.totalorder %s27, 0
      %p96 = por %p94, %p95
      %s97 = ssub.s32 %s28, %s40
      %p98 = scmp.eq.s32.totalorder %s97, 0
      %s100 = sadd.s32 %s99, 1
      %s101 = scalar_select %p98, %s99, %s100
      %p104 = pneg %p98
      %p105 = scmp.eq.s32.totalorder %s21, 1
      %p106 = por %p104, %p105
      %p107 = scmp.ne.s32.totalorder %s99, %s102
      %p108 = scmp.eq.s32.totalorder %s21, 0
      %p109 = por %p107, %p108
      %p110 = scmp.ne.s32.totalorder %s99, %s102
      %p111 = scmp.eq.s32.totalorder %s26, 1
      %p112 = por %p110, %p111
      %p113 = scmp.ne.s32.totalorder %s102, %s103
      %p114 = scmp.eq.s32.totalorder %s26, 0
      %p115 = por %p113, %p114
      %p116 = scmp.ne.s32.totalorder %s102, %s103
      %p117 = scmp.eq.s32.totalorder %s27, 1
      %p118 = por %p116, %p117
      %p120 = scmp.ne.s32.totalorder %s103, %s119
      %p121 = scmp.eq.s32.totalorder %s27, 0
      %p122 = por %p120, %p121
      %s123 = ssub.s32 %s28, %s40
      %p124 = scmp.eq.s32.totalorder %s123, 0
      %s126 = sadd.s32 %s125, 1
      %s127 = scalar_select %p124, %s125, %s126
      %p130 = pneg %p124
      %p131 = scmp.eq.s32.totalorder %s21, 1
      %p132 = por %p130, %p131
      %p133 = scmp.ne.s32.totalorder %s125, %s128
      %p134 = scmp.eq.s32.totalorder %s21, 0
      %p135 = por %p133, %p134
      %p136 = scmp.ne.s32.totalorder %s125, %s128
      %p137 = scmp.eq.s32.totalorder %s26, 1
      %p138 = por %p136, %p137
      %p139 = scmp.ne.s32.totalorder %s128, %s129
      %p140 = scmp.eq.s32.totalorder %s26, 0
      %p141 = por %p139, %p140
      %p142 = scmp.ne.s32.totalorder %s128, %s129
      %p143 = scmp.eq.s32.totalorder %s27, 1
      %p144 = por %p142, %p143
      %p146 = scmp.ne.s32.totalorder %s129, %s145
      %p147 = scmp.eq.s32.totalorder %s27, 0
      %p148 = por %p146, %p147
      %s149 = ssub.s32 %s28, %s40
      %p150 = scmp.eq.s32.totalorder %s149, 0
      %s152 = sadd.s32 %s151, 1
      %s153 = scalar_select %p150, %s151, %s152
      %p156 = pneg %p150
      %p157 = scmp.eq.s32.totalorder %s21, 1
      %p158 = por %p156, %p157
      %p159 = scmp.ne.s32.totalorder %s151, %s154
      %p160 = scmp.eq.s32.totalorder %s21, 0
      %p161 = por %p159, %p160
      %p162 = scmp.ne.s32.totalorder %s151, %s154
      %p163 = scmp.eq.s32.totalorder %s26, 1
      %p164 = por %p162, %p163
      %p165 = scmp.ne.s32.totalorder %s154, %s155
      %p166 = scmp.eq.s32.totalorder %s26, 0
      %p167 = por %p165, %p166
      %p168 = scmp.ne.s32.totalorder %s154, %s155
      %p169 = scmp.eq.s32.totalorder %s27, 1
      %p170 = por %p168, %p169
      %p172 = scmp.ne.s32.totalorder %s155, %s171
      %p173 = scmp.eq.s32.totalorder %s27, 0
      %p174 = por %p172, %p173
      %s175 = ssub.s32 %s28, %s40
      %p176 = scmp.eq.s32.totalorder %s175, 0
      %s178 = sadd.s32 %s177, 1
      %s179 = scalar_select %p176, %s177, %s178
      %p182 = pneg %p176
      %p183 = scmp.eq.s32.totalorder %s21, 1
      %p184 = por %p182, %p183
      %p185 = scmp.ne.s32.totalorder %s177, %s180
      %p186 = scmp.eq.s32.totalorder %s21, 0
      %p187 = por %p185, %p186
      %p188 = scmp.ne.s32.totalorder %s177, %s180
      %p189 = scmp.eq.s32.totalorder %s26, 1
      %p190 = por %p188, %p189
      %p191 = scmp.ne.s32.totalorder %s180, %s181
      %p192 = scmp.eq.s32.totalorder %s26, 0
      %p193 = por %p191, %p192
      %p194 = scmp.ne.s32.totalorder %s180, %s181
      %p195 = scmp.eq.s32.totalorder %s27, 1
      %p196 = por %p194, %p195
      %p198 = scmp.ne.s32.totalorder %s181, %s197
      %p199 = scmp.eq.s32.totalorder %s27, 0
      %p200 = por %p198, %p199
      %p201 = scmp.le.s32.totalorder 1, %s21
      %p202 = scmp.lt.s32.totalorder %s21, 3
      %p203 = pnand %p201, %p202
      %p204 = pneg %p203
      // Predicated region
      $region9: #{tpu_custom_call.1} parent=5 // pred_check
        _
      $region10: #{tpu_custom_call.1} parent=5 // pred_check_branch
        %206 = sbr.rel (%p203) target = $region12
      $region11: #{tpu_custom_call.1} parent=5 // pred_region
        %s207 = ssub.s32 %s21, 1
      $region12: #{tpu_custom_call.1} parent=5 // pred_fallthru
        _
      %p208 = scmp.lt.s32.totalorder %s21, 2
      // Predicated region
      $region13: #{tpu_custom_call.1} parent=5 // pred_check
        %p209 = pneg %p208
      $region14: #{tpu_custom_call.1} parent=5 // pred_check_branch
        %211 = sbr.rel (%p209) target = $region16
      $region15: #{tpu_custom_call.1} parent=5 // pred_region
        // Predicated region
        $region17: #{tpu_custom_call.1} parent=15 // pred_check
          %p212 = pneg %p55
        $region18: #{tpu_custom_call.1} parent=15 // pred_check_branch
          %214 = sbr.rel (%p212) target = $region20
        $region19: #{tpu_custom_call.1} parent=15 // pred_region
          %s215 = sadd.s32 %s28, %s29
          %p216 = scmp.lt.s32.totalorder %s215, 1
          %s217 = scalar_select %p216, %s215, 1
          %s218 = smul.addr %s217, 8
          %s219 = scalar_lea.vmem %s0, %s218
          %s220 = sadd.s32 %s28, %s29
        $region20: #{tpu_custom_call.1} parent=15 // pred_fallthru
          _
        // Predicated region
        $region21: #{tpu_custom_call.1} parent=15 // pred_check
          %p221 = pneg %p83
        $region22: #{tpu_custom_call.1} parent=15 // pred_check_branch
          %223 = sbr.rel (%p221) target = $region24
        $region23: #{tpu_custom_call.1} parent=15 // pred_region
          %s224 = sadd.s32 %s28, %s29
          %p225 = scmp.lt.s32.totalorder %s224, 1
          %s226 = scalar_select %p225, %s224, 1
          %s227 = smul.addr %s226, 8
          %s228 = scalar_lea.vmem %s1, %s227
          %s229 = sadd.s32 %s28, %s29
        $region24: #{tpu_custom_call.1} parent=15 // pred_fallthru
          _
      $region16: #{tpu_custom_call.1} parent=5 // pred_fallthru
        _
      %p230 = scmp.le.s32.totalorder 1, %s21
      %p231 = scmp.lt.s32.totalorder %s21, 3
      %p232 = pnand %p230, %p231
      %p233 = pneg %p232
      // Predicated region
      $region25: #{tpu_custom_call.1} parent=5 // pred_check
        _
      $region26: #{tpu_custom_call.1} parent=5 // pred_check_branch
        %235 = sbr.rel (%p232) target = $region28
      $region27: #{tpu_custom_call.1} parent=5 // pred_region
        %s236 = ssub.s32 %s21, 1
        %s237 = sadd.s32 %s30, %s31
        %p238 = scmp.lt.s32.totalorder %s237, 1
        %s239 = scalar_select %p238, %s237, 1
        %s240 = smul.addr %s239, 8
        %s241 = scalar_lea.vmem %s0, %s240
        %p242 = pneg %p61
        %p243 = pneg %p58
        %s244 = sadd.s32 %s30, %s31
        %p245 = scmp.lt.s32.totalorder %s244, 1
        %s246 = scalar_select %p245, %s244, 1
        %s247 = smul.addr %s246, 8
        %s248 = scalar_lea.vmem %s1, %s247
        %p249 = pneg %p89
        %p250 = pneg %p86
        %p251 = pneg %p115
        %p252 = pneg %p112
        %s253 = sand.u32 %s102, 1
        %s254 = scalar_lea.sflag [#allocation3], %s253
        %s255 = sand.u32 %s102, 1
        %s256 = scalar_lea.vmem [#allocation2], %s255
        %p257 = pneg %p141
        %p258 = pneg %p138
        %s259 = sand.u32 %s26, 1
        %s260 = scalar_lea.sflag [#allocation5], %s259
        %s261 = sand.u32 %s128, 1
        %s262 = scalar_lea.vmem [#allocation4], %s261
        %p263 = pneg %p167
        %p264 = pneg %p164
        %s265 = sand.u32 %s26, 1
        %s266 = scalar_lea.sflag [#allocation5], %s265
        %s267 = sand.u32 %s154, 1
        %s268 = scalar_lea.vmem [#allocation6], %s267
        %p269 = pneg %p193
        %p270 = pneg %p190
        %s271 = sand.u32 %s180, 1
        %s272 = scalar_lea.sflag [#allocation8], %s271
        %s273 = sand.u32 %s180, 1
        %s274 = scalar_lea.vmem [#allocation7], %s273
        %s275 = sadd.s32 %s30, %s31
        %p276 = scmp.lt.s32.totalorder %s275, 1
        %s277 = scalar_select %p276, %s275, 1
        %s278 = smul.addr %s277, 8
        %s279 = scalar_lea.vmem %s0, %s278
        %s280 = sadd.s32 %s30, %s31
        %s281 = sadd.s32 %s30, %s31
        %p282 = scmp.lt.s32.totalorder %s281, 1
        %s283 = scalar_select %p282, %s281, 1
        %s284 = smul.addr %s283, 8
        %s285 = scalar_lea.vmem %s1, %s284
        %s286 = sadd.s32 %s30, %s31
        %p287 = scmp.eq.s32.totalorder %s31, 0
        // Predicated region
        $region29: #{tpu_custom_call.1} parent=27 // pred_check
          %p288 = pneg %p287
        $region30: #{tpu_custom_call.1} parent=27 // pred_check_branch
          %290 = sbr.rel (%p288) target = $region32
        $region31: #{tpu_custom_call.1} parent=27 // pred_region
          %291 = vst [vmem:[%s256] sm:$0x1] 0.0
          %292 = vst [vmem:[%s262] sm:$0x1] 0.0
          %293 = vst [vmem:[%s268] sm:$0x1] 0.0
          %294 = vst [vmem:[%s274] sm:$0x1] 0.0
        $region32: #{tpu_custom_call.1} parent=27 // pred_fallthru
          _
        %v295 = vld [vmem:[%s285] sm:$0xff]
        %v296 = vld [vmem:[%s279] sm:$0xff]
        %v297 = vlaneseq
        %v298 = vand.u32 %v297, 127
        %299 = vset.pattern.permute.xlu0 0
        %300 = vperm.xlu0 %299, %v296
        %v301 = vpop.permute.xlu0 %300
        %vm302 = vcmp.eq.s32.totalorder %v298, %v301
        %v303 = vsel %vm302, 1, 0
        %v304 = vcvt.s32.f32 %v303
        %v305 = vand.u32 2147483647, %v295
        %v306 = vsub.f32 0.0, %v305
        %v307 = vmul.f32 %v306, 1.442695
        %v308 = vpow.pop %v307
        %v309 = vmax.f32 %v295, 0.0
        %v310 = vmul.f32 %v295, %v304
        %v311 = vsub.f32 %v309, %v310
        %v312 = vadd.f32 %v308, 1.0
        %v313 = vlog2.pop %v312
        %v314 = vmul.f32 %v313, 0.6931472
        %v315 = vmul.f32 -0.5, %v308
        %v316 = vadd.f32 %v315, 1.0
        %v317 = vmul.f32 %v316, %v308
        %v318 = vand.u32 2147483647, %v308
        %vm319 = vcmp.lt.f32.partialorder %v318, 0.0004427343
        %v320 = vsel %vm319, %v317, %v314
        %v321 = vadd.f32 %v311, %v320
        %v322 = vadd.f32 %v308, 1.0
        %v323 = vrcp.pop %v322
        %v324 = vmul.f32 1.0, %v323
        %vm325 = vcmp.ge.f32.partialorder %v295, 0.0
        %vm326 = vmxor %vm302, %vm325
        %v327 = vmul.f32 %v308, %v324
        %v328 = vsel %vm326, %v324, %v327
        %v329 = vld [vmem:[%s256] sm:$0x1]
        %v330 = vrot.slane %v321, 4
        %v331 = vadd.f32 %v321, %v330
        %v332 = vrot.slane %v331, 2
        %v333 = vadd.f32 %v331, %v332
        %v334 = vrot.slane %v333, 1
        %v335 = vadd.f32 %v333, %v334
        %v336 = vadd.f32 %v329, %v335
        %337 = vst [vmem:[%s256] sm:$0x1] %v336
        %v338 = vld [vmem:[%s262] sm:$0x1]
        %v339 = vmul.f32 %v321, %v304
        %v340 = vrot.slane %v339, 4
        %v341 = vadd.f32 %v339, %v340
        %v342 = vrot.slane %v341, 2
        %v343 = vadd.f32 %v341, %v342
        %v344 = vrot.slane %v343, 1
        %v345 = vadd.f32 %v343, %v344
        %v346 = vadd.f32 %v338, %v345
        %347 = vst [vmem:[%s262] sm:$0x1] %v346
        %v348 = vld [vmem:[%s268] sm:$0x1]
        %v349 = vrot.slane %v328, 4
        %v350 = vadd.f32 %v328, %v349
        %v351 = vrot.slane %v350, 2
        %v352 = vadd.f32 %v350, %v351
        %v353 = vrot.slane %v352, 1
        %v354 = vadd.f32 %v352, %v353
        %v355 = vadd.f32 %v348, %v354
        %356 = vst [vmem:[%s268] sm:$0x1] %v355
        %v357 = vld [vmem:[%s274] sm:$0x1]
        %v358 = vmul.f32 %v328, %v304
        %v359 = vrot.slane %v358, 4
        %v360 = vadd.f32 %v358, %v359
        %v361 = vrot.slane %v360, 2
        %v362 = vadd.f32 %v360, %v361
        %v363 = vrot.slane %v362, 1
        %v364 = vadd.f32 %v362, %v363
        %v365 = vadd.f32 %v357, %v364
        %366 = vst [vmem:[%s274] sm:$0x1] %v365
        %s367 = sand.u32 %s102, 1
        %s368 = scalar_lea.sflag [#allocation3], %s367
        %s369 = sand.u32 %s102, 1
        %s370 = scalar_lea.vmem [#allocation2], %s369
        %s371 = sand.u32 %s26, 1
        %s372 = scalar_lea.sflag [#allocation5], %s371
        %s373 = sand.u32 %s128, 1
        %s374 = scalar_lea.vmem [#allocation4], %s373
        %s375 = sand.u32 %s26, 1
        %s376 = scalar_lea.sflag [#allocation5], %s375
        %s377 = sand.u32 %s154, 1
        %s378 = scalar_lea.vmem [#allocation6], %s377
        %s379 = sand.u32 %s180, 1
        %s380 = scalar_lea.sflag [#allocation8], %s379
        %s381 = sand.u32 %s180, 1
        %s382 = scalar_lea.vmem [#allocation7], %s381
        // Predicated region
        $region33: #{tpu_custom_call.1} parent=27 // pred_check
          %p383 = pneg %p112
        $region34: #{tpu_custom_call.1} parent=27 // pred_check_branch
          %385 = sbr.rel (%p383) target = $region36
        $region35: #{tpu_custom_call.1} parent=27 // pred_region
          %s387 = ssub.s32 16, 16
          %388 = vsyncadd %s368, %s387
          %s389 = smul.addr %s30, 16
          %s390 = scalar_lea.hbm %s2, %s389
          %s392 = sshll.u32 %s370, 4
          %s393 = int_to_ptr.vmem [resolvable:$true] %s392
          %395 = dma.vmem_to_hbm [thread:$0]  %s393, 16, %s390, %s368
        $region36: #{tpu_custom_call.1} parent=27 // pred_fallthru
          _
        // Predicated region
        $region37: #{tpu_custom_call.1} parent=27 // pred_check
          %p396 = pneg %p138
        $region38: #{tpu_custom_call.1} parent=27 // pred_check_branch
          %398 = sbr.rel (%p396) target = $region40
        $region39: #{tpu_custom_call.1} parent=27 // pred_region
          %s400 = ssub.s32 16, 16
          %401 = vsyncadd %s372, %s400
          %s402 = smul.addr %s30, 16
          %s403 = scalar_lea.hbm %s3, %s402
          %s405 = sshll.u32 %s374, 4
          %s406 = int_to_ptr.vmem [resolvable:$true] %s405
          %408 = dma.vmem_to_hbm [thread:$0]  %s406, 16, %s403, %s372
        $region40: #{tpu_custom_call.1} parent=27 // pred_fallthru
          _
        // Predicated region
        $region41: #{tpu_custom_call.1} parent=27 // pred_check
          %p409 = pneg %p164
        $region42: #{tpu_custom_call.1} parent=27 // pred_check_branch
          %411 = sbr.rel (%p409) target = $region44
        $region43: #{tpu_custom_call.1} parent=27 // pred_region
          %s413 = ssub.s32 16, 16
          %414 = vsyncadd %s376, %s413
          %s415 = smul.addr %s30, 16
          %s416 = scalar_lea.hbm %s4, %s415
          %s418 = sshll.u32 %s378, 4
          %s419 = int_to_ptr.vmem [resolvable:$true] %s418
          %421 = dma.vmem_to_hbm [thread:$0]  %s419, 16, %s416, %s376
        $region44: #{tpu_custom_call.1} parent=27 // pred_fallthru
          _
        // Predicated region
        $region45: #{tpu_custom_call.1} parent=27 // pred_check
          %p422 = pneg %p190
        $region46: #{tpu_custom_call.1} parent=27 // pred_check_branch
          %424 = sbr.rel (%p422) target = $region48
        $region47: #{tpu_custom_call.1} parent=27 // pred_region
          %s426 = ssub.s32 16, 16
          %427 = vsyncadd %s380, %s426
          %s428 = smul.addr %s30, 16
          %s429 = scalar_lea.hbm %s5, %s428
          %s431 = sshll.u32 %s382, 4
          %s432 = int_to_ptr.vmem [resolvable:$true] %s431
          %434 = dma.vmem_to_hbm [thread:$0]  %s432, 16, %s429, %s380
        $region48: #{tpu_custom_call.1} parent=27 // pred_fallthru
          _
      $region28: #{tpu_custom_call.1} parent=5 // pred_fallthru
        _
      %p435 = scmp.le.s32.totalorder 2, %s21
      // Predicated region
      $region49: #{tpu_custom_call.1} parent=5 // pred_check
        %p436 = pneg %p435
      $region50: #{tpu_custom_call.1} parent=5 // pred_check_branch
        %438 = sbr.rel (%p436) target = $region52
      $region51: #{tpu_custom_call.1} parent=5 // pred_region
        %s439 = ssub.s32 %s21, 2
        // Predicated region
        $region53: #{tpu_custom_call.1} parent=51 // pred_check
          %p440 = pneg %p118
        $region54: #{tpu_custom_call.1} parent=51 // pred_check_branch
          %442 = sbr.rel (%p440) target = $region56
        $region55: #{tpu_custom_call.1} parent=51 // pred_region
          %s443 = sand.u32 %s103, 1
          %s444 = scalar_lea.sflag [#allocation3], %s443
          %s445 = sand.u32 %s103, 1
          %s446 = scalar_lea.vmem [#allocation2], %s445
          %447 = dma.done %s444, 16
        $region56: #{tpu_custom_call.1} parent=51 // pred_fallthru
          _
        // Predicated region
        $region57: #{tpu_custom_call.1} parent=51 // pred_check
          %p448 = pneg %p144
        $region58: #{tpu_custom_call.1} parent=51 // pred_check_branch
          %450 = sbr.rel (%p448) target = $region60
        $region59: #{tpu_custom_call.1} parent=51 // pred_region
          %s451 = sand.u32 %s27, 1
          %s452 = scalar_lea.sflag [#allocation5], %s451
          %s453 = sand.u32 %s129, 1
          %s454 = scalar_lea.vmem [#allocation4], %s453
          %455 = dma.done %s452, 16
        $region60: #{tpu_custom_call.1} parent=51 // pred_fallthru
          _
        // Predicated region
        $region61: #{tpu_custom_call.1} parent=51 // pred_check
          %p456 = pneg %p170
        $region62: #{tpu_custom_call.1} parent=51 // pred_check_branch
          %458 = sbr.rel (%p456) target = $region64
        $region63: #{tpu_custom_call.1} parent=51 // pred_region
          %s459 = sand.u32 %s27, 1
          %s460 = scalar_lea.sflag [#allocation5], %s459
          %s461 = sand.u32 %s155, 1
          %s462 = scalar_lea.vmem [#allocation6], %s461
          %463 = dma.done %s460, 16
        $region64: #{tpu_custom_call.1} parent=51 // pred_fallthru
          _
        // Predicated region
        $region65: #{tpu_custom_call.1} parent=51 // pred_check
          %p464 = pneg %p196
        $region66: #{tpu_custom_call.1} parent=51 // pred_check_branch
          %466 = sbr.rel (%p464) target = $region68
        $region67: #{tpu_custom_call.1} parent=51 // pred_region
          %s467 = sand.u32 %s181, 1
          %s468 = scalar_lea.sflag [#allocation8], %s467
          %s469 = sand.u32 %s181, 1
          %s470 = scalar_lea.vmem [#allocation7], %s469
          %471 = dma.done %s468, 16
        $region68: #{tpu_custom_call.1} parent=51 // pred_fallthru
          _
      $region52: #{tpu_custom_call.1} parent=5 // pred_fallthru
        _
    $region6: #{tpu_custom_call.1} parent=1 // loop_footer
      %s25 = sadd.s32 1, %s21
    $region7: #{tpu_custom_call.1} parent=1 // loop_footer_branch
      %20 = sbr.rel target = $region3
    $region8: #{tpu_custom_call.1} parent=1 // loop_exit
      _
    %472 = vsyncpa [#allocation3], 1
    %s473 = scalar_lea.sflag [#allocation3], 1
    %474 = vsyncpa %s473, 1
    %475 = vsyncpa [#allocation5], 1
    %s476 = scalar_lea.sflag [#allocation5], 1
    %477 = vsyncpa %s476, 1
    %478 = vsyncpa [#allocation8], 1
    %s479 = scalar_lea.sflag [#allocation8], 1
    %480 = vsyncpa %s479, 1

</llo_original>
